<compile_context>
chip_gen: v7x
topology: tpu7x:2x2x1
jax: 0.10.0
libtpu: 0.0.40
codegen_flags: <defaults>
</compile_context>

<pallas_src>
import functools

import jax
import jax.numpy as jnp
from jax import lax
from jax.experimental import pallas as pl
from jax.experimental.pallas import tpu as pltpu


_SLACK_BYTES = 2 * 1024 * 1024          # weights, regs, misc headroom
_MLP_CHUNK_BYTES = 4 * 1024 * 1024      # budget for the (TQ, tkc, kvd) tanh block


# --------------------------------------------------------------------------- #
# In-kernel helpers
# --------------------------------------------------------------------------- #

def _softmax_rows(e):
    """Softmax over the last axis of f32 `e` (rows are independent).

    EUP approximate reciprocal plus one Newton step (back to ~f32 accuracy)
    and a per-row multiply instead of a per-element divide.  Rows sum to 1 up
    to ~f32 roundoff (not exactly at the last ulp).
    """
    m = jnp.max(e, axis=-1, keepdims=True)
    p = jnp.exp(e - m)
    l = jnp.sum(p, axis=-1, keepdims=True)
    inv = pl.reciprocal(l, approx=True)      # EUP slot
    inv = inv * (2.0 - l * inv)              # Newton step: rel err -> eps^2
    return p * inv


def _finish_batched(attn_f32, kv, ctx_ref, attn_ref):
    """ctx = attn @ kv (batched) and store both outputs."""
    ctx = jnp.einsum('bqk,bkd->bqd', attn_f32.astype(kv.dtype), kv,
                     preferred_element_type=jnp.float32)
    attn_ref[...] = attn_f32.astype(attn_ref.dtype)
    ctx_ref[...] = ctx.astype(ctx_ref.dtype)


# --------------------------------------------------------------------------- #
# Kernels
# --------------------------------------------------------------------------- #

def _dot_kernel(q_ref, kv_ref, ctx_ref, attn_ref):
    q = q_ref[...]                            # (B, TQ, d)   native dtype
    kv = kv_ref[...]                          # (B, KVL, d)
    e = jnp.einsum('bqd,bkd->bqk', q, kv, preferred_element_type=jnp.float32)
    _finish_batched(_softmax_rows(e), kv, ctx_ref, attn_ref)


def _general_kernel(kv_first, q_ref, kv_ref, w_ref, ctx_ref, attn_ref):
    # kv_first: w_ref holds Wa (kvd, qd); otherwise w_ref holds Wa^T (qd, kvd).
    # Both contract the resident weight on dim 0 -> no per-step relayout.
    q = q_ref[...]                            # (B, TQ, qd)
    kv = kv_ref[...]                          # (B, KVL, kvd)
    w = w_ref[...]
    B, TQ, qd = q.shape
    KVL, kvd = kv.shape[1], kv.shape[2]

    if kv_first:
        # e = q @ (kv @ Wa)^T  -- cheaper when ql > kvl (fewer MXU passes).
        kvw = lax.dot_general(kv.reshape(B * KVL, kvd), w,
                              (((1,), (0,)), ((), ())),
                              preferred_element_type=jnp.float32)
        # NOTE: exact for f32 activations; one extra rounding for bf16/fp16.
        kvw = kvw.reshape(B, KVL, qd).astype(q.dtype)
        e = jnp.einsum('bqd,bkd->bqk', q, kvw,
                       preferred_element_type=jnp.float32)
    else:
        # e = (q @ Wa^T) @ kv^T -- batch folded into the M dim of the W matmul.
        qw = lax.dot_general(q.reshape(B * TQ, qd), w,
                             (((1,), (0,)), ((), ())),
                             preferred_element_type=jnp.float32)
        qw = qw.reshape(B, TQ, kvd).astype(kv.dtype)
        e = jnp.einsum('bqd,bkd->bqk', qw, kv,
                       preferred_element_type=jnp.float32)

    _finish_batched(_softmax_rows(e), kv, ctx_ref, attn_ref)


def _mlp_kernel(tkc, q_ref, kv_ref, wq_t_ref, wk_t_ref, va_ref,
                ctx_ref, attn_ref, hq_ref, hk_ref, e_ref):
    # Wa([q ; kv]) == q @ Wq^T + kv @ Wk^T (Wa split along its input axis), so
    # the (ql, kvl, qd+kvd) concat is never materialized.  Weights arrive
    # pre-transposed so the MXU contracts them on dim 0.
    B, TQ, qd = q_ref.shape
    KVL, kvd = kv_ref.shape[1], kv_ref.shape[2]
    va = va_ref[...].astype(jnp.float32)                       # (1, kvd)

    # Shared-weight projections: batch folded into the MXU M dimension,
    # results parked in VMEM scratch so the batch loop indexes refs.
    hq_ref[...] = lax.dot_general(
        q_ref[...].reshape(B * TQ, qd), wq_t_ref[...],
        (((1,), (0,)), ((), ())),
        preferred_element_type=jnp.float32).reshape(B, TQ, kvd)
    hk_ref[...] = lax.dot_general(
        kv_ref[...].reshape(B * KVL, kvd), wk_t_ref[...],
        (((1,), (0,)), ((), ())),
        preferred_element_type=jnp.float32).reshape(B, KVL, kvd)

    n_full, rem = divmod(KVL, tkc)

    @pl.loop(0, B)                    # real loop -> bounded live ranges
    def _(bi):
        hq_b = hq_ref[bi]             # (TQ, kvd) f32

        def e_chunk(j0, size):
            # (TQ, size, kvd) tanh block, bounded by tkc; written straight
            # into the e scratch so chunks never coexist.
            # TODO(synk): bf16 tanh (v6e/v7x EUP) is a further ~2x on this
            #             block; skipped pending accuracy validation (v5e has
            #             no bf16 EUP).
            hk_c = hk_ref[bi, pl.ds(j0, size), :]              # (size, kvd)
            h = jnp.tanh(hq_b[:, None, :] + hk_c[None, :, :])  # (TQ, size, kvd)
            e_ref[:, pl.ds(j0, size)] = jnp.sum(h * va, axis=-1)

        if n_full == 1 and rem == 0:
            e_chunk(0, KVL)
        else:
            @pl.loop(0, n_full)
            def _(c):
                e_chunk(pl.multiple_of(c * tkc, 128), tkc)     # tkc % 128 == 0
            if rem:
                e_chunk(n_full * tkc, rem)

        attn = _softmax_rows(e_ref[...])                       # (TQ, KVL)
        kv_b = kv_ref[bi]                                      # (KVL, kvd)
        ctx = jnp.dot(attn.astype(kv_b.dtype), kv_b,
                      preferred_element_type=jnp.float32)      # (TQ, kvd)
        attn_ref[bi] = attn.astype(attn_ref.dtype)
        ctx_ref[bi] = ctx.astype(ctx_ref.dtype)


# --------------------------------------------------------------------------- #
# Wrapper
# --------------------------------------------------------------------------- #

def attention_pallas(q_seq, kv_seq, params, attn_type):
    b, ql, qd = q_seq.shape
    _, kvl, kvd = kv_seq.shape
    out_dtype = q_seq.dtype
    itemsize = q_seq.dtype.itemsize

    # ---- generation-aware VMEM budget ------------------------------------ #
    try:
        vmem_cap = int(pltpu.get_tpu_info().vmem_capacity_bytes)
    except Exception:
        vmem_cap = 64 * 1024 * 1024            # conservative (v7x per-core)
    vmem_limit = min(vmem_cap * 3 // 4, 100 * 1024 * 1024)  # 48 MiB v7x / ~96-100 MiB v5e,v6e
    budget = vmem_limit // 2                   # per-program residency target

    # ---- tile selection --------------------------------------------------- #
    tq_cap = 512 if vmem_cap > 96 * 1024 * 1024 else 256
    TQ = ql if ql <= tq_cap else tq_cap

    def vmem_bytes(bt, tq, kv_bufs):
        """Per-program VMEM estimate: double-buffered blocks + f32 temps."""
        per_b = (2 * (tq * qd + tq * kvd + tq * kvl) * itemsize  # q, ctx, attn (x2 bufs)
                 + kv_bufs * kvl * kvd * itemsize                # kv slab
                 + tq * kvl * 4)                                 # f32 e / softmax
        extra = _SLACK_BYTES
        if attn_type == 'general':
            per_b += max(tq * kvd, kvl * qd) * 4                 # qw / kvw f32
        elif attn_type == 'mlp':
            per_b += (tq * kvd + kvl * kvd) * 4                  # hq + hk scratch
            extra += tq * kvl * 4 + _MLP_CHUNK_BYTES             # e scratch + tanh chunk
        return bt * per_b + extra

    # Fold batch elements into one program so shared-weight matmuls see
    # b_tile*TQ rows and the ~0.35us per-grid-step overhead is amortized.
    # Folding is only done when the (B*rows, d) reshapes stay sublane-aligned.
    fold_ok = (TQ % 8 == 0) and (kvl % 8 == 0 or attn_type == 'dot')
    b_tile = min(b, max(1, 512 // max(TQ, 1))) if fold_ok else 1
    while b % b_tile:
        b_tile -= 1
    while b_tile > 1 and vmem_bytes(b_tile, TQ, 2) > budget:
        b_tile -= 1
        while b % b_tile:
            b_tile -= 1
    while TQ >= 256 and TQ % 16 == 0 and vmem_bytes(b_tile, TQ, 2) > budget:
        TQ //= 2
    # TODO(synk): if vmem_bytes(1, TQ, 2) still exceeds the budget (very long
    #             kvl) switch to a kv-tiled grid axis + online softmax.

    # Keep both v7x TensorCores busy: guarantee >= 2 programs when possible.
    if (b // b_tile) * pl.cdiv(ql, TQ) < 2:
        if b_tile > 1:
            b_tile = max(1, b_tile // 2)
            while b % b_tile:
                b_tile -= 1
        elif TQ == ql and ql % 16 == 0:
            TQ //= 2
    grid = (b // b_tile, pl.cdiv(ql, TQ))

    # mlp: 128-aligned kv-chunk so the (TQ, tkc, kvd) f32 tanh block is bounded.
    tkc = kvl
    if attn_type == 'mlp':
        rows = max(1, TQ * kvd * 4)
        tkc = _MLP_CHUNK_BYTES // rows
        if tkc >= kvl:
            tkc = kvl
        else:
            tkc = min(kvl, max(128, (tkc // 128) * 128))

    # ---- kernel, weights (pre-transposed), cost estimate ------------------ #
    flops = 2 * b * ql * kvl * (qd + kvd)
    transc = b * ql * kvl                                     # exp
    weight_bytes = 0
    if attn_type == 'dot':
        kernel = _dot_kernel
        weight_args = ()
    elif attn_type == 'general':
        w = params['Wa']                                      # (kvd, qd) torch layout
        kv_first = ql > kvl
        w_arg = w if kv_first else w.T                        # RHS contracted on dim 0
        kernel = functools.partial(_general_kernel, kv_first)
        weight_args = (w_arg,)
        flops += 2 * b * min(ql, kvl) * qd * kvd
        weight_bytes += w.size * w.dtype.itemsize
    elif attn_type == 'mlp':
        wa = params['Wa']                                     # (kvd, qd + kvd)
        va = params['Va']                                     # (1, kvd)
        wa_t = wa.T                                           # (qd + kvd, kvd)
        wq_t, wk_t = wa_t[:qd], wa_t[qd:]                     # Wq^T, Wk^T
        kernel = functools.partial(_mlp_kernel, tkc)
        weight_args = (wq_t, wk_t, va)
        flops += 2 * b * (ql * qd + kvl * kvd) * kvd          # hq / hk projections
        flops += 3 * b * ql * kvl * kvd                       # add + mul + reduce
        transc += b * ql * kvl * kvd                          # tanh
        weight_bytes += wa.size * wa.dtype.itemsize + va.size * va.dtype.itemsize
    else:
        raise ValueError(attn_type)

    bytes_accessed = (itemsize * (b * ql * qd + b * kvl * kvd
                                  + b * ql * kvd + b * ql * kvl)
                      + weight_bytes)
    cost = pl.CostEstimate(flops=int(flops), transcendentals=int(transc),
                           bytes_accessed=int(bytes_accessed))

    def call(single_buffer_resident):
        # Resident operands (kv slab + weights) don't change along the inner
        # q-tile axis; single-buffering them halves their VMEM footprint.
        res_kw = ({'pipeline_mode': pl.Buffered(1)}
                  if single_buffer_resident else {})
        q_spec = pl.BlockSpec((b_tile, TQ, qd), lambda bt, qt: (bt, qt, 0))
        kv_spec = pl.BlockSpec((b_tile, kvl, kvd), lambda bt, qt: (bt, 0, 0),
                               **res_kw)
        ctx_spec = pl.BlockSpec((b_tile, TQ, kvd), lambda bt, qt: (bt, qt, 0))
        attn_spec = pl.BlockSpec((b_tile, TQ, kvl), lambda bt, qt: (bt, qt, 0))
        w_specs = [pl.BlockSpec(wt.shape, lambda bt, qt: (0, 0), **res_kw)
                   for wt in weight_args]
        in_specs = [q_spec, kv_spec] + w_specs

        scratch = []
        if attn_type == 'mlp':
            scratch = [pltpu.VMEM((b_tile, TQ, kvd), jnp.float32),   # hq
                       pltpu.VMEM((b_tile, kvl, kvd), jnp.float32),  # hk
                       pltpu.VMEM((TQ, kvl), jnp.float32)]           # e

        return pl.pallas_call(
            kernel,
            out_shape=(jax.ShapeDtypeStruct((b, ql, kvd), out_dtype),
                       jax.ShapeDtypeStruct((b, ql, kvl), out_dtype)),
            grid=grid,
            in_specs=in_specs,
            out_specs=(ctx_spec, attn_spec),
            scratch_shapes=scratch,
            compiler_params=pltpu.CompilerParams(
                dimension_semantics=("parallel", "parallel"),
                vmem_limit_bytes=int(vmem_limit)),
            cost_estimate=cost,
        )(q_seq, kv_seq, *weight_args)

    try:
        ctx, attn = call(True)
    except Exception:
        # pl.Buffered(1) not accepted on this jax version / lowering path:
        # fall back to default double-buffering (correct, just more VMEM).
        ctx, attn = call(False)
    return ctx, attn


# --------------------------------------------------------------------------- #
# Pure-JAX reference (matches the torch module)
# --------------------------------------------------------------------------- #

def attention_ref(q_seq, kv_seq, params, attn_type):
    b, ql, qd = q_seq.shape
    _, kvl, kvd = kv_seq.shape
    if attn_type == 'mlp':
        wa, va = params['Wa'], params['Va']
        q_ = jnp.broadcast_to(q_seq[:, :, None, :], (b, ql, kvl, qd))
        kv_ = jnp.broadcast_to(kv_seq[:, None, :, :], (b, ql, kvl, kvd))
        cat = jnp.concatenate([q_, kv_], axis=3)
        e = jnp.einsum('bqkc,dc->bqkd', cat, wa)
        e = jnp.einsum('bqkd,od->bqko', jnp.tanh(e), va)[..., 0]
    elif attn_type == 'dot':
        e = jnp.einsum('bqd,bkd->bqk', q_seq, kv_seq)
    elif attn_type == 'general':
        qw = jnp.einsum('bqd,od->bqo', q_seq, params['Wa'])
        e = jnp.einsum('bqd,bkd->bqk', qw, kv_seq)
    attn = jax.nn.softmax(e, axis=-1)
    ctx = jnp.einsum('bqk,bkd->bqd', attn, kv_seq)
    return ctx, attn


# --------------------------------------------------------------------------- #
# Main
# --------------------------------------------------------------------------- #

if __name__ == "__main__":
    key = jax.random.PRNGKey(0)
    b, ql, kvl = 2, 8, 8
    q_dim = kv_dim = 32
    init_range = 0.2

    k_q, k_kv, k_wa_mlp, k_va, k_wa_gen = jax.random.split(key, 5)
    q_seq = jax.random.normal(k_q, (b, ql, q_dim), dtype=jnp.float32)
    kv_seq = jax.random.normal(k_kv, (b, kvl, kv_dim), dtype=jnp.float32)

    # Deterministic uniform(-0.2, 0.2) init, matching the module's init_weight().
    params_by_type = {
        'dot': {},
        'general': {
            'Wa': jax.random.uniform(k_wa_gen, (kv_dim, q_dim),
                                     minval=-init_range, maxval=init_range),
        },
        'mlp': {
            'Wa': jax.random.uniform(k_wa_mlp, (kv_dim, q_dim + kv_dim),
                                     minval=-init_range, maxval=init_range),
            'Va': jax.random.uniform(k_va, (1, kv_dim),
                                     minval=-init_range, maxval=init_range),
        },
    }

    ok = True
    for attn_type in ('dot', 'general', 'mlp'):
        params = params_by_type[attn_type]
        ctx, attn = attention_pallas(q_seq, kv_seq, params, attn_type)
        jax.block_until_ready((ctx, attn))
        ctx_r, attn_r = attention_ref(q_seq, kv_seq, params, attn_type)
        ok &= bool(jnp.allclose(ctx, ctx_r, atol=1e-4, rtol=1e-4))
        ok &= bool(jnp.allclose(attn, attn_r, atol=1e-4, rtol=1e-4))

    if ok:
        print("KERNEL_OK")
    else:
        print("MISMATCH")
</pallas_src>

<mosaic_0001>
module attributes {stable_mosaic.version = 11 : i64} {
  func.func @_dot_kernel(%arg0: i32, %arg1: i32, %arg2: memref<1x8x32xf32, #tpu.memory_space<vmem>>, %arg3: memref<1x8x32xf32, #tpu.memory_space<vmem>>, %arg4: memref<1x8x32xf32, #tpu.memory_space<vmem>>, %arg5: memref<1x8x8xf32, #tpu.memory_space<vmem>>) attributes {dimension_semantics = [#tpu.dimension_semantics<parallel>, #tpu.dimension_semantics<parallel>], iteration_bounds = array<i64: 2, 1>, scalar_prefetch = 0 : i64, scratch_operands = 0 : i64, tpu.core_type = #tpu.core_type<tc>, window_params = [{transform_indices = @transform_0, window_bounds = array<i64: 1, 8, 32>}, {pipeline_mode = #tpu.pipeline_mode<synchronous>, transform_indices = @transform_1, window_bounds = array<i64: 1, 8, 32>}, {transform_indices = @transform_2, window_bounds = array<i64: 1, 8, 32>}, {transform_indices = @transform_3, window_bounds = array<i64: 1, 8, 8>}]} {
    %c0 = arith.constant 0 : index
    %c0_0 = arith.constant 0 : index
    %c0_1 = arith.constant 0 : index
    %0 = vector.load %arg2[%c0, %c0_0, %c0_1] : memref<1x8x32xf32, #tpu.memory_space<vmem>>, vector<1x8x32xf32>
    %c0_2 = arith.constant 0 : index
    %c0_3 = arith.constant 0 : index
    %c0_4 = arith.constant 0 : index
    %1 = vector.load %arg3[%c0_2, %c0_3, %c0_4] : memref<1x8x32xf32, #tpu.memory_space<vmem>>, vector<1x8x32xf32>
    "tpu.trace_start"() <{level = 10 : i32, message = "bqd,bkd->bqk"}> : () -> ()
    %cst = arith.constant dense<0.000000e+00> : vector<1x8x8xf32>
    %2 = tpu.matmul %0, %1, %cst {dimension_numbers = #tpu.dot_dimension_numbers<[2], [2], [1], [1], [0, 0, 0, 1, 1, 1], [0], [0]>} : vector<1x8x32xf32>, vector<1x8x32xf32>, vector<1x8x8xf32> -> vector<1x8x8xf32>
    "tpu.trace_stop"() : () -> ()
    %cst_5 = arith.constant dense<0xFF800000> : vector<1x8xf32>
    %3 = vector.multi_reduction <maximumf>, %2, %cst_5 [2] : vector<1x8x8xf32> to vector<1x8xf32>
    %4 = vector.shape_cast %3 : vector<1x8xf32> to vector<1x8x1xf32>
    %5 = vector.broadcast %4 : vector<1x8x1xf32> to vector<1x8x8xf32>
    %6 = arith.subf %2, %5 : vector<1x8x8xf32>
    %7 = math.exp %6 : vector<1x8x8xf32>
    %cst_6 = arith.constant dense<0.000000e+00> : vector<1x8xf32>
    %8 = vector.multi_reduction <add>, %7, %cst_6 [2] : vector<1x8x8xf32> to vector<1x8xf32>
    %9 = vector.shape_cast %8 : vector<1x8xf32> to vector<1x8x1xf32>
    %10 = tpu.reciprocal %9 {approx = true} : vector<1x8x1xf32> -> vector<1x8x1xf32>
    %11 = arith.mulf %9, %10 : vector<1x8x1xf32>
    %cst_7 = arith.constant 2.000000e+00 : f32
    %12 = vector.broadcast %cst_7 : f32 to vector<1x8x1xf32>
    %13 = arith.subf %12, %11 : vector<1x8x1xf32>
    %14 = arith.mulf %10, %13 : vector<1x8x1xf32>
    %15 = vector.broadcast %14 : vector<1x8x1xf32> to vector<1x8x8xf32>
    %16 = arith.mulf %7, %15 : vector<1x8x8xf32>
    "tpu.trace_start"() <{level = 10 : i32, message = "bqk,bkd->bqd"}> : () -> ()
    %cst_8 = arith.constant dense<0.000000e+00> : vector<1x8x32xf32>
    %17 = tpu.matmul %16, %1, %cst_8 {dimension_numbers = #tpu.dot_dimension_numbers<[2], [1], [1], [2], [0, 0, 0, 1, 1, 2], [0], [0]>} : vector<1x8x8xf32>, vector<1x8x32xf32>, vector<1x8x32xf32> -> vector<1x8x32xf32>
    "tpu.trace_stop"() : () -> ()
    %c0_9 = arith.constant 0 : index
    %c0_10 = arith.constant 0 : index
    %c0_11 = arith.constant 0 : index
    %18 = vector.load %arg5[%c0_9, %c0_10, %c0_11] : memref<1x8x8xf32, #tpu.memory_space<vmem>>, vector<1x8x8xf32>
    tpu.vector_store %arg5[%c0_9, %c0_10, %c0_11], %16 {strides = array<i32>} : memref<1x8x8xf32, #tpu.memory_space<vmem>>, vector<1x8x8xf32>,
    %c0_12 = arith.constant 0 : index
    %c0_13 = arith.constant 0 : index
    %c0_14 = arith.constant 0 : index
    %19 = vector.load %arg4[%c0_12, %c0_13, %c0_14] : memref<1x8x32xf32, #tpu.memory_space<vmem>>, vector<1x8x32xf32>
    tpu.vector_store %arg4[%c0_12, %c0_13, %c0_14], %17 {strides = array<i32>} : memref<1x8x32xf32, #tpu.memory_space<vmem>>, vector<1x8x32xf32>,
    return
  }
  func.func @transform_0(%arg0: i32, %arg1: i32) -> (i32, i32, i32) {
    %c0_i32 = arith.constant 0 : i32
    %c0_i32_0 = arith.constant 0 : i32
    return %arg0, %arg1, %c0_i32 : i32, i32, i32
  }
  func.func @transform_1(%arg0: i32, %arg1: i32) -> (i32, i32, i32) {
    %c0_i32 = arith.constant 0 : i32
    %c0_i32_0 = arith.constant 0 : i32
    %c0_i32_1 = arith.constant 0 : i32
    return %arg0, %c0_i32, %c0_i32_0 : i32, i32, i32
  }
  func.func @transform_2(%arg0: i32, %arg1: i32) -> (i32, i32, i32) {
    %c0_i32 = arith.constant 0 : i32
    %c0_i32_0 = arith.constant 0 : i32
    return %arg0, %arg1, %c0_i32 : i32, i32, i32
  }
  func.func @transform_3(%arg0: i32, %arg1: i32) -> (i32, i32, i32) {
    %c0_i32 = arith.constant 0 : i32
    %c0_i32_0 = arith.constant 0 : i32
    return %arg0, %arg1, %c0_i32 : i32, i32, i32
  }
}

module attributes {stable_mosaic.version = 11 : i64} {
  func.func @_dot_kernel(%arg0: i32, %arg1: i32, %arg2: memref<1x8x32xf32, #tpu.memory_space<vmem>>, %arg3: memref<1x8x32xf32, #tpu.memory_space<vmem>>, %arg4: memref<1x8x32xf32, #tpu.memory_space<vmem>>, %arg5: memref<1x8x8xf32, #tpu.memory_space<vmem>>) attributes {dimension_semantics = [#tpu.dimension_semantics<parallel>, #tpu.dimension_semantics<parallel>], iteration_bounds = array<i64: 2, 1>, scalar_prefetch = 0 : i64, scratch_operands = 0 : i64, tpu.core_type = #tpu.core_type<tc>, window_params = [{transform_indices = @transform_0, window_bounds = array<i64: 1, 8, 32>}, {transform_indices = @transform_1, window_bounds = array<i64: 1, 8, 32>}, {transform_indices = @transform_2, window_bounds = array<i64: 1, 8, 32>}, {transform_indices = @transform_3, window_bounds = array<i64: 1, 8, 8>}]} {
    %c0 = arith.constant 0 : index
    %c0_0 = arith.constant 0 : index
    %c0_1 = arith.constant 0 : index
    %0 = vector.load %arg2[%c0, %c0_0, %c0_1] : memref<1x8x32xf32, #tpu.memory_space<vmem>>, vector<1x8x32xf32>
    %c0_2 = arith.constant 0 : index
    %c0_3 = arith.constant 0 : index
    %c0_4 = arith.constant 0 : index
    %1 = vector.load %arg3[%c0_2, %c0_3, %c0_4] : memref<1x8x32xf32, #tpu.memory_space<vmem>>, vector<1x8x32xf32>
    "tpu.trace_start"() <{level = 10 : i32, message = "bqd,bkd->bqk"}> : () -> ()
    %cst = arith.constant dense<0.000000e+00> : vector<1x8x8xf32>
    %2 = tpu.matmul %0, %1, %cst {dimension_numbers = #tpu.dot_dimension_numbers<[2], [2], [1], [1], [0, 0, 0, 1, 1, 1], [0], [0]>} : vector<1x8x32xf32>, vector<1x8x32xf32>, vector<1x8x8xf32> -> vector<1x8x8xf32>
    "tpu.trace_stop"() : () -> ()
    %cst_5 = arith.constant dense<0xFF800000> : vector<1x8xf32>
    %3 = vector.multi_reduction <maximumf>, %2, %cst_5 [2] : vector<1x8x8xf32> to vector<1x8xf32>
    %4 = vector.shape_cast %3 : vector<1x8xf32> to vector<1x8x1xf32>
    %5 = vector.broadcast %4 : vector<1x8x1xf32> to vector<1x8x8xf32>
    %6 = arith.subf %2, %5 : vector<1x8x8xf32>
    %7 = math.exp %6 : vector<1x8x8xf32>
    %cst_6 = arith.constant dense<0.000000e+00> : vector<1x8xf32>
    %8 = vector.multi_reduction <add>, %7, %cst_6 [2] : vector<1x8x8xf32> to vector<1x8xf32>
    %9 = vector.shape_cast %8 : vector<1x8xf32> to vector<1x8x1xf32>
    %10 = tpu.reciprocal %9 {approx = true} : vector<1x8x1xf32> -> vector<1x8x1xf32>
    %11 = arith.mulf %9, %10 : vector<1x8x1xf32>
    %cst_7 = arith.constant 2.000000e+00 : f32
    %12 = vector.broadcast %cst_7 : f32 to vector<1x8x1xf32>
    %13 = arith.subf %12, %11 : vector<1x8x1xf32>
    %14 = arith.mulf %10, %13 : vector<1x8x1xf32>
    %15 = vector.broadcast %14 : vector<1x8x1xf32> to vector<1x8x8xf32>
    %16 = arith.mulf %7, %15 : vector<1x8x8xf32>
    "tpu.trace_start"() <{level = 10 : i32, message = "bqk,bkd->bqd"}> : () -> ()
    %cst_8 = arith.constant dense<0.000000e+00> : vector<1x8x32xf32>
    %17 = tpu.matmul %16, %1, %cst_8 {dimension_numbers = #tpu.dot_dimension_numbers<[2], [1], [1], [2], [0, 0, 0, 1, 1, 2], [0], [0]>} : vector<1x8x8xf32>, vector<1x8x32xf32>, vector<1x8x32xf32> -> vector<1x8x32xf32>
    "tpu.trace_stop"() : () -> ()
    %c0_9 = arith.constant 0 : index
    %c0_10 = arith.constant 0 : index
    %c0_11 = arith.constant 0 : index
    %18 = vector.load %arg5[%c0_9, %c0_10, %c0_11] : memref<1x8x8xf32, #tpu.memory_space<vmem>>, vector<1x8x8xf32>
    tpu.vector_store %arg5[%c0_9, %c0_10, %c0_11], %16 {strides = array<i32>} : memref<1x8x8xf32, #tpu.memory_space<vmem>>, vector<1x8x8xf32>,
    %c0_12 = arith.constant 0 : index
    %c0_13 = arith.constant 0 : index
    %c0_14 = arith.constant 0 : index
    %19 = vector.load %arg4[%c0_12, %c0_13, %c0_14] : memref<1x8x32xf32, #tpu.memory_space<vmem>>, vector<1x8x32xf32>
    tpu.vector_store %arg4[%c0_12, %c0_13, %c0_14], %17 {strides = array<i32>} : memref<1x8x32xf32, #tpu.memory_space<vmem>>, vector<1x8x32xf32>,
    return
  }
  func.func @transform_0(%arg0: i32, %arg1: i32) -> (i32, i32, i32) {
    %c0_i32 = arith.constant 0 : i32
    %c0_i32_0 = arith.constant 0 : i32
    return %arg0, %arg1, %c0_i32 : i32, i32, i32
  }
  func.func @transform_1(%arg0: i32, %arg1: i32) -> (i32, i32, i32) {
    %c0_i32 = arith.constant 0 : i32
    %c0_i32_0 = arith.constant 0 : i32
    %c0_i32_1 = arith.constant 0 : i32
    return %arg0, %c0_i32, %c0_i32_0 : i32, i32, i32
  }
  func.func @transform_2(%arg0: i32, %arg1: i32) -> (i32, i32, i32) {
    %c0_i32 = arith.constant 0 : i32
    %c0_i32_0 = arith.constant 0 : i32
    return %arg0, %arg1, %c0_i32 : i32, i32, i32
  }
  func.func @transform_3(%arg0: i32, %arg1: i32) -> (i32, i32, i32) {
    %c0_i32 = arith.constant 0 : i32
    %c0_i32_0 = arith.constant 0 : i32
    return %arg0, %arg1, %c0_i32 : i32, i32, i32
  }
}

</mosaic_0001>

<llo_original>
// kernel: tpu_custom_call.1
$region0: #{tpu_custom_call.1}
  #allocation0 [shape = 'u32[]', space=smem, size = 0x4, offset = 0x4, fixed_abs, tag = 'smem constant byte address 0x4 - core index']
  #allocation1 [shape = 'u32[144,128]{1,0:T(1,128)}', space=vmem, size = 0x12000, scoped, tag = 'internal scratch']
  %s0 = inlined_call_operand.hbm [shape: f32[2,8,32], index: 0, kind: input, shape index: {}]
  %s1 = inlined_call_operand.hbm [shape: f32[2,8,32], index: 1, kind: input, shape index: {}]
  %s2 = inlined_call_operand.hbm [shape: f32[2,8,32], index: 2, kind: output, shape index: {0}]
  %s3 = inlined_call_operand.hbm [shape: f32[2,8,8], index: 3, kind: output, shape index: {1}]
  %4 = xla_tuple %s2, %s3
  %s5 = sld [smem:[#allocation0]]
  $region57: #{tpu_custom_call.1} parent=0
    _
  %s7 = ssub.s32 1, %s5
  %s8 = scalar_select 0, %s7, %s5
  $region1: #{tpu_custom_call.1} parent=0
    #allocation2 [shape = 'u8[8192]{0}', space=vmem, size = 0x2000, scoped, tag = 'input window, operand 0']
    #allocation3 [shape = 's32[2]{0}', space=sflag, size = 0x8, scoped, tag = 'scoped memory for tpu_custom_call.1']
    #allocation4 [shape = 's32[2]{0}', space=sflag, size = 0x8, scoped, tag = 'scoped memory for tpu_custom_call.1']
    #allocation5 [shape = 'u8[4096]{0}', space=vmem, size = 0x1000, scoped, tag = 'input window, operand 1, single buffered']
    #allocation6 [shape = 's32[1]{0}', space=sflag, size = 0x4, scoped, tag = 'scoped memory for tpu_custom_call.1']
    #allocation7 [shape = 'u8[8192]{0}', space=vmem, size = 0x2000, scoped, tag = 'output window, operand 0']
    #allocation8 [shape = 'u8[8192]{0}', space=vmem, size = 0x2000, scoped, tag = 'output window, operand 1']
    #allocation9 [shape = 's32[2]{0}', space=sflag, size = 0x8, scoped, tag = 'scoped memory for tpu_custom_call.1']
    %9 = vsyncpa [#allocation3], 0
    %s10 = scalar_lea.sflag [#allocation3], 1
    %11 = vsyncpa %s10, 0
    %12 = vsyncpa [#allocation6], 0
    %13 = vsyncpa [#allocation4], 0
    %s14 = scalar_lea.sflag [#allocation4], 1
    %15 = vsyncpa %s14, 0
    %16 = vsyncpa [#allocation9], 0
    %s17 = scalar_lea.sflag [#allocation9], 1
    %18 = vsyncpa %s17, 0
    loop: start=0, step=1, limit=4
    $region2: #{tpu_custom_call.1} parent=1 // loop_pre_header
      _
    $region3: #{tpu_custom_call.1} parent=1 // loop_header
      %s20 = sphi 0, %s24
      %p21 = scmp.ge.s32.totalorder %s20, 4
      %s27 = sphi 0, %s39
      %s28 = sphi 0, %s35
      %s29 = sphi 0, %s27
      %s30 = sphi 0, %s28
      %s31 = sphi 0, %s29
      %s32 = sphi 0, %s30
      %s44 = sphi 0, %s46
      %s47 = sphi 0, %s44
      %s48 = sphi 0, %s47
      %s64 = sphi 0, %s48
      %s70 = sphi 0, %s72
      %s73 = sphi 0, %s70
      %s74 = sphi 0, %s73
      %s90 = sphi 0, %s74
      %s98 = sphi 0, %s100
      %s101 = sphi 0, %s98
      %s102 = sphi 0, %s101
      %s118 = sphi 0, %s102
      %s126 = sphi 0, %s128
      %s129 = sphi 0, %s126
      %s130 = sphi 0, %s129
      %s146 = sphi 0, %s130
    $region4: #{tpu_custom_call.1} parent=1 // loop_header_branch
      %23 = sbr.rel (%p21) target = $region8
    $region5: #{tpu_custom_call.1} parent=1 // loop_body
      %s25 = ssub.s32 %s20, 1
      %s26 = ssub.s32 %s20, 2
      %s33 = sadd.s32 1, %s28
      %p34 = scmp.ge.s32.totalorder %s33, 1
      %s35 = scalar_select %p34, 0, %s33
      %s36 = sadd.s32 1, %s27
      %s37 = scalar_select %p34, %s36, %s27
      %p38 = scmp.ge.s32.totalorder %s37, 2
      %s39 = scalar_select %p38, 0, %s37
      %s40 = ssub.s32 %s27, %s39
      %s41 = ssub.s32 %s28, %s35
      %s42 = sor.u32 %s40, %s41
      %p43 = scmp.eq.s32.totalorder %s42, 0
      %s45 = sadd.s32 %s44, 1
      %s46 = scalar_select %p43, %s44, %s45
      %p49 = pneg %p43
      %p50 = scmp.eq.s32.totalorder %s20, 1
      %p51 = por %p49, %p50
      %p52 = scmp.ne.s32.totalorder %s44, %s47
      %p53 = scmp.eq.s32.totalorder %s20, 0
      %p54 = por %p52, %p53
      %p55 = scmp.ne.s32.totalorder %s44, %s47
      %p56 = scmp.eq.s32.totalorder %s25, 1
      %p57 = por %p55, %p56
      %p58 = scmp.ne.s32.totalorder %s47, %s48
      %p59 = scmp.eq.s32.totalorder %s25, 0
      %p60 = por %p58, %p59
      %p61 = scmp.ne.s32.totalorder %s47, %s48
      %p62 = scmp.eq.s32.totalorder %s26, 1
      %p63 = por %p61, %p62
      %p65 = scmp.ne.s32.totalorder %s48, %s64
      %p66 = scmp.eq.s32.totalorder %s26, 0
      %p67 = por %p65, %p66
      %s68 = ssub.s32 %s27, %s39
      %p69 = scmp.eq.s32.totalorder %s68, 0
      %s71 = sadd.s32 %s70, 1
      %s72 = scalar_select %p69, %s70, %s71
      %p75 = pneg %p69
      %p76 = scmp.eq.s32.totalorder %s20, 1
      %p77 = por %p75, %p76
      %p78 = scmp.ne.s32.totalorder %s70, %s73
      %p79 = scmp.eq.s32.totalorder %s20, 0
      %p80 = por %p78, %p79
      %p81 = scmp.ne.s32.totalorder %s70, %s73
      %p82 = scmp.eq.s32.totalorder %s25, 1
      %p83 = por %p81, %p82
      %p84 = scmp.ne.s32.totalorder %s73, %s74
      %p85 = scmp.eq.s32.totalorder %s25, 0
      %p86 = por %p84, %p85
      %p87 = scmp.ne.s32.totalorder %s73, %s74
      %p88 = scmp.eq.s32.totalorder %s26, 1
      %p89 = por %p87, %p88
      %p91 = scmp.ne.s32.totalorder %s74, %s90
      %p92 = scmp.eq.s32.totalorder %s26, 0
      %p93 = por %p91, %p92
      %s94 = ssub.s32 %s27, %s39
      %s95 = ssub.s32 %s28, %s35
      %s96 = sor.u32 %s94, %s95
      %p97 = scmp.eq.s32.totalorder %s96, 0
      %s99 = sadd.s32 %s98, 1
      %s100 = scalar_select %p97, %s98, %s99
      %p103 = pneg %p97
      %p104 = scmp.eq.s32.totalorder %s20, 1
      %p105 = por %p103, %p104
      %p106 = scmp.ne.s32.totalorder %s98, %s101
      %p107 = scmp.eq.s32.totalorder %s20, 0
      %p108 = por %p106, %p107
      %p109 = scmp.ne.s32.totalorder %s98, %s101
      %p110 = scmp.eq.s32.totalorder %s25, 1
      %p111 = por %p109, %p110
      %p112 = scmp.ne.s32.totalorder %s101, %s102
      %p113 = scmp.eq.s32.totalorder %s25, 0
      %p114 = por %p112, %p113
      %p115 = scmp.ne.s32.totalorder %s101, %s102
      %p116 = scmp.eq.s32.totalorder %s26, 1
      %p117 = por %p115, %p116
      %p119 = scmp.ne.s32.totalorder %s102, %s118
      %p120 = scmp.eq.s32.totalorder %s26, 0
      %p121 = por %p119, %p120
      %s122 = ssub.s32 %s27, %s39
      %s123 = ssub.s32 %s28, %s35
      %s124 = sor.u32 %s122, %s123
      %p125 = scmp.eq.s32.totalorder %s124, 0
      %s127 = sadd.s32 %s126, 1
      %s128 = scalar_select %p125, %s126, %s127
      %p131 = pneg %p125
      %p132 = scmp.eq.s32.totalorder %s20, 1
      %p133 = por %p131, %p132
      %p134 = scmp.ne.s32.totalorder %s126, %s129
      %p135 = scmp.eq.s32.totalorder %s20, 0
      %p136 = por %p134, %p135
      %p137 = scmp.ne.s32.totalorder %s126, %s129
      %p138 = scmp.eq.s32.totalorder %s25, 1
      %p139 = por %p137, %p138
      %p140 = scmp.ne.s32.totalorder %s129, %s130
      %p141 = scmp.eq.s32.totalorder %s25, 0
      %p142 = por %p140, %p141
      %p143 = scmp.ne.s32.totalorder %s129, %s130
      %p144 = scmp.eq.s32.totalorder %s26, 1
      %p145 = por %p143, %p144
      %p147 = scmp.ne.s32.totalorder %s130, %s146
      %p148 = scmp.eq.s32.totalorder %s26, 0
      %p149 = por %p147, %p148
      %p150 = scmp.le.s32.totalorder 1, %s20
      %p151 = scmp.lt.s32.totalorder %s20, 3
      %p152 = pnand %p150, %p151
      %p153 = pneg %p152
      // Predicated region
      $region9: #{tpu_custom_call.1} parent=5 // pred_check
        _
      $region10: #{tpu_custom_call.1} parent=5 // pred_check_branch
        %155 = sbr.rel (%p152) target = $region12
      $region11: #{tpu_custom_call.1} parent=5 // pred_region
        %s156 = ssub.s32 %s20, 1
        // Predicated region
        $region13: #{tpu_custom_call.1} parent=11 // pred_check
          %p157 = pneg %p86
        $region14: #{tpu_custom_call.1} parent=11 // pred_check_branch
          %159 = sbr.rel (%p157) target = $region16
        $region15: #{tpu_custom_call.1} parent=11 // pred_region
          %s161 = ssub.s32 128, 128
          %162 = vsyncadd [#allocation6], %s161
          %s163 = smul.addr %s29, 128
          %s164 = scalar_lea.hbm %s1, %s163
          %s166 = sshll.u32 [#allocation5], 4
          %s167 = int_to_ptr.vmem [resolvable:$true] %s166
          %169 = dma.hbm_to_vmem [thread:$0]  %s164, 128, %s167, [#allocation6]
        $region16: #{tpu_custom_call.1} parent=11 // pred_fallthru
          _
      $region12: #{tpu_custom_call.1} parent=5 // pred_fallthru
        _
      %p170 = scmp.lt.s32.totalorder %s20, 2
      // Predicated region
      $region17: #{tpu_custom_call.1} parent=5 // pred_check
        %p171 = pneg %p170
      $region18: #{tpu_custom_call.1} parent=5 // pred_check_branch
        %173 = sbr.rel (%p171) target = $region20
      $region19: #{tpu_custom_call.1} parent=5 // pred_region
        // Predicated region
        $region21: #{tpu_custom_call.1} parent=19 // pred_check
          %p174 = pneg %p54
        $region22: #{tpu_custom_call.1} parent=19 // pred_check_branch
          %176 = sbr.rel (%p174) target = $region24
        $region23: #{tpu_custom_call.1} parent=19 // pred_region
          %s177 = sand.u32 %s44, 1
          %s178 = scalar_lea.sflag [#allocation3], %s177
          %s179 = sand.u32 %s44, 1
          %s180 = smul.addr %s179, 8
          %s181 = scalar_lea.vmem [#allocation2], %s180
          %s183 = ssub.s32 128, 128
          %184 = vsyncadd %s178, %s183
          %s185 = sadd.s32 %s28, %s27
          %s186 = smul.addr %s185, 128
          %s187 = scalar_lea.hbm %s0, %s186
          %s189 = sshll.u32 %s181, 4
          %s190 = int_to_ptr.vmem [resolvable:$true] %s189
          %192 = dma.hbm_to_vmem [thread:$0]  %s187, 128, %s190, %s178
        $region24: #{tpu_custom_call.1} parent=19 // pred_fallthru
          _
      $region20: #{tpu_custom_call.1} parent=5 // pred_fallthru
        _
      %p193 = scmp.le.s32.totalorder 1, %s20
      %p194 = scmp.lt.s32.totalorder %s20, 3
      %p195 = pnand %p193, %p194
      %p196 = pneg %p195
      // Predicated region
      $region25: #{tpu_custom_call.1} parent=5 // pred_check
        _
      $region26: #{tpu_custom_call.1} parent=5 // pred_check_branch
        %198 = sbr.rel (%p195) target = $region28
      $region27: #{tpu_custom_call.1} parent=5 // pred_region
        %s199 = ssub.s32 %s20, 1
        %s200 = sand.u32 %s47, 1
        %s201 = scalar_lea.sflag [#allocation3], %s200
        %s202 = sand.u32 %s47, 1
        %s203 = smul.addr %s202, 8
        %s204 = scalar_lea.vmem [#allocation2], %s203
        // Predicated region
        $region29: #{tpu_custom_call.1} parent=27 // pred_check
          %p205 = pneg %p60
        $region30: #{tpu_custom_call.1} parent=27 // pred_check_branch
          %207 = sbr.rel (%p205) target = $region32
        $region31: #{tpu_custom_call.1} parent=27 // pred_region
          %208 = dma.done %s201, 128
        $region32: #{tpu_custom_call.1} parent=27 // pred_fallthru
          _
        // Predicated region
        $region33: #{tpu_custom_call.1} parent=27 // pred_check
          %p209 = pneg %p86
        $region34: #{tpu_custom_call.1} parent=27 // pred_check_branch
          %211 = sbr.rel (%p209) target = $region36
        $region35: #{tpu_custom_call.1} parent=27 // pred_region
          %212 = dma.done [#allocation6], 128
        $region36: #{tpu_custom_call.1} parent=27 // pred_fallthru
          _
        %s213 = sand.u32 %s47, 1
        %s214 = scalar_lea.sflag [#allocation3], %s213
        %s215 = sand.u32 %s47, 1
        %s216 = smul.addr %s215, 8
        %s217 = scalar_lea.vmem [#allocation2], %s216
        %p218 = pneg %p60
        %p219 = pneg %p57
        %p220 = pneg %p86
        %p221 = pneg %p83
        %p222 = pneg %p114
        %p223 = pneg %p111
        %s224 = sand.u32 %s101, 1
        %s225 = scalar_lea.sflag [#allocation4], %s224
        %s226 = sand.u32 %s101, 1
        %s227 = smul.addr %s226, 8
        %s228 = scalar_lea.vmem [#allocation7], %s227
        %p229 = pneg %p142
        %p230 = pneg %p139
        %s231 = sand.u32 %s129, 1
        %s232 = scalar_lea.sflag [#allocation9], %s231
        %s233 = sand.u32 %s129, 1
        %s234 = smul.addr %s233, 8
        %s235 = scalar_lea.vmem [#allocation8], %s234
        %v236 = vld [vmem:[%s204] sm:$0xff]
        %v237 = vld [vmem:[#allocation5] sm:$0xff]
        %vm238 = vcmask 261120
        %v240 = vsel %vm238, %v236, 0
        %v243 = vsel %vm238, %v237, 0
        %245 = vmatprep.subr.mxu0 0.0
        %246 = vmatpush1.xpose.msra.mxu0 %v243
        %247 = vmatprep.subr.mxu0 0.0
        %248 = vmatpush1.xpose.msra.mxu0 0.0
        %249 = vmatprep.subr.mxu0 0.0
        %250 = vmatpush1.xpose.msra.mxu0 0.0
        %251 = vmatprep.subr.mxu0 0.0
        %252 = vmatpush1.xpose.msra.mxu0 0.0
        %253 = vmatprep.subr.mxu0 0.0
        %254 = vmatpush1.xpose.msra.mxu0 0.0
        %255 = vmatprep.subr.mxu0 0.0
        %256 = vmatpush1.xpose.msra.mxu0 0.0
        %257 = vmatprep.subr.mxu0 0.0
        %258 = vmatpush1.xpose.msra.mxu0 0.0
        %259 = vmatprep.subr.mxu0 0.0
        %260 = vmatpush1.xpose.msra.mxu0 0.0
        %261 = vmatprep.subr.mxu0 0.0
        %262 = vmatpush1.xpose.msra.mxu0 0.0
        %263 = vmatprep.subr.mxu0 0.0
        %264 = vmatpush1.xpose.msra.mxu0 0.0
        %265 = vmatprep.subr.mxu0 0.0
        %266 = vmatpush1.xpose.msra.mxu0 0.0
        %267 = vmatprep.subr.mxu0 0.0
        %268 = vmatpush1.xpose.msra.mxu0 0.0
        %269 = vmatprep.subr.mxu0 0.0
        %270 = vmatpush1.xpose.msra.mxu0 0.0
        %271 = vmatprep.subr.mxu0 0.0
        %272 = vmatpush1.xpose.msra.mxu0 0.0
        %273 = vmatprep.subr.mxu0 0.0
        %274 = vmatpush1.xpose.msra.mxu0 0.0
        %275 = vmatprep.subr.mxu0 0.0
        %276 = vmatpush1.xpose.msra.mxu0 0.0
        %277 = vmatprep.subr.mxu0 0.0
        %278 = vmatpush1.xpose.msra.mxu0 0.0
        %279 = vmatprep.subr.mxu0 0.0
        %280 = vmatpush1.xpose.msra.mxu0 0.0
        %281 = vmatprep.subr.mxu0 0.0
        %282 = vmatpush1.xpose.msra.mxu0 0.0
        %283 = vmatprep.subr.mxu0 0.0
        %284 = vmatpush1.xpose.msra.mxu0 0.0
        %285 = vmatprep.subr.mxu0 0.0
        %286 = vmatpush1.xpose.msra.mxu0 0.0
        %287 = vmatprep.subr.mxu0 0.0
        %288 = vmatpush1.xpose.msra.mxu0 0.0
        %289 = vmatprep.subr.mxu0 0.0
        %290 = vmatpush1.xpose.msra.mxu0 0.0
        %291 = vmatprep.subr.mxu0 0.0
        %292 = vmatpush1.xpose.msra.mxu0 0.0
        %293 = vmatprep.subr.mxu0 0.0
        %294 = vmatpush1.xpose.msra.mxu0 0.0
        %295 = vmatprep.subr.mxu0 0.0
        %296 = vmatpush1.xpose.msra.mxu0 0.0
        %297 = vmatprep.subr.mxu0 0.0
        %298 = vmatpush1.xpose.msra.mxu0 0.0
        %299 = vmatprep.subr.mxu0 0.0
        %300 = vmatpush1.xpose.msra.mxu0 0.0
        %301 = vmatprep.subr.mxu0 0.0
        %302 = vmatpush1.xpose.msra.mxu0 0.0
        %303 = vmatprep.subr.mxu0 0.0
        %304 = vmatpush1.xpose.msra.mxu0 0.0
        %305 = vmatprep.subr.mxu0 0.0
        %306 = vmatpush1.xpose.msra.mxu0 0.0
        %307 = vmatprep.subr.mxu0 0.0
        %308 = vmatpush1.xpose.msra.mxu0 0.0
        %309 = vmatprep.mubr.f32.mxu0 0.0
        %310 = vmatmul.mubr.f32.gmra.mrb[0].mxu0 %v240
        %v311 = vpop.f32.mrb[0].mxu0
        %v312 = vadd.f32 0.0, %v311
        %v313 = vpop.f32.mrb[0].mxu0
        %314 = vdwg.mxu0
        %vm315 = vcmask 64512
        %v316 = vsel %vm315, %v312, -inf
        %317 = vmax.xlane.f32.xlu0 %v316
        %v318 = vpop.xlane.xlu0 %317
        %v319 = vsub.f32 %v312, %v318
        %v320 = vmul.f32 %v319, 1.442695
        %v321 = vpow.pop %v320
        %v322 = vsel %vm315, %v321, 0.0
        %323 = vadd.xlane.f32.xlu0 %v322
        %v324 = vpop.xlane.xlu0 %323
        %v325 = vrcp.pop %v324
        %v326 = vmul.f32 %v324, %v325
        %v327 = vsub.f32 2.0, %v326
        %v328 = vmul.f32 %v325, %v327
        %v329 = vmul.f32 %v321, %v328
        %v331 = vsel %vm315, %v329, 0
        %333 = vmatprep.subr.mxu0 0.0
        %334 = vmatpush1.msra.mxu0 %v237
        %335 = vmatprep.subr.mxu0 0.0
        %336 = vmatpush1.msra.mxu0 0.0
        %337 = vmatprep.subr.mxu0 0.0
        %338 = vmatpush1.msra.mxu0 0.0
        %339 = vmatprep.subr.mxu0 0.0
        %340 = vmatpush1.msra.mxu0 0.0
        %341 = vmatprep.subr.mxu0 0.0
        %342 = vmatpush1.msra.mxu0 0.0
        %343 = vmatprep.subr.mxu0 0.0
        %344 = vmatpush1.msra.mxu0 0.0
        %345 = vmatprep.subr.mxu0 0.0
        %346 = vmatpush1.msra.mxu0 0.0
        %347 = vmatprep.subr.mxu0 0.0
        %348 = vmatpush1.msra.mxu0 0.0
        %349 = vmatprep.subr.mxu0 0.0
        %350 = vmatpush1.msra.mxu0 0.0
        %351 = vmatprep.subr.mxu0 0.0
        %352 = vmatpush1.msra.mxu0 0.0
        %353 = vmatprep.subr.mxu0 0.0
        %354 = vmatpush1.msra.mxu0 0.0
        %355 = vmatprep.subr.mxu0 0.0
        %356 = vmatpush1.msra.mxu0 0.0
        %357 = vmatprep.subr.mxu0 0.0
        %358 = vmatpush1.msra.mxu0 0.0
        %359 = vmatprep.subr.mxu0 0.0
        %360 = vmatpush1.msra.mxu0 0.0
        %361 = vmatprep.subr.mxu0 0.0
        %362 = vmatpush1.msra.mxu0 0.0
        %363 = vmatprep.subr.mxu0 0.0
        %364 = vmatpush1.msra.mxu0 0.0
        %365 = vmatprep.subr.mxu0 0.0
        %366 = vmatpush1.msra.mxu0 0.0
        %367 = vmatprep.subr.mxu0 0.0
        %368 = vmatpush1.msra.mxu0 0.0
        %369 = vmatprep.subr.mxu0 0.0
        %370 = vmatpush1.msra.mxu0 0.0
        %371 = vmatprep.subr.mxu0 0.0
        %372 = vmatpush1.msra.mxu0 0.0
        %373 = vmatprep.subr.mxu0 0.0
        %374 = vmatpush1.msra.mxu0 0.0
        %375 = vmatprep.subr.mxu0 0.0
        %376 = vmatpush1.msra.mxu0 0.0
        %377 = vmatprep.subr.mxu0 0.0
        %378 = vmatpush1.msra.mxu0 0.0
        %379 = vmatprep.subr.mxu0 0.0
        %380 = vmatpush1.msra.mxu0 0.0
        %381 = vmatprep.subr.mxu0 0.0
        %382 = vmatpush1.msra.mxu0 0.0
        %383 = vmatprep.subr.mxu0 0.0
        %384 = vmatpush1.msra.mxu0 0.0
        %385 = vmatprep.subr.mxu0 0.0
        %386 = vmatpush1.msra.mxu0 0.0
        %387 = vmatprep.subr.mxu0 0.0
        %388 = vmatpush1.msra.mxu0 0.0
        %389 = vmatprep.subr.mxu0 0.0
        %390 = vmatpush1.msra.mxu0 0.0
        %391 = vmatprep.subr.mxu0 0.0
        %392 = vmatpush1.msra.mxu0 0.0
        %393 = vmatprep.subr.mxu0 0.0
        %394 = vmatpush1.msra.mxu0 0.0
        %395 = vmatprep.subr.mxu0 0.0
        %396 = vmatpush1.msra.mxu0 0.0
        %397 = vmatprep.mubr.f32.mxu0 0.0
        %398 = vmatmul.mubr.f32.gmra.mrb[0].mxu0 %v331
        %v399 = vpop.f32.mrb[0].mxu0
        %v400 = vadd.f32 0.0, %v399
        %v401 = vpop.f32.mrb[0].mxu0
        %402 = vdwg.mxu0
        %403 = vst.msk [vmem:[%s235] sm:$0xff] %vm315, %v329
        %404 = vst.msk [vmem:[%s228] sm:$0xff] %vm238, %v400
        %s405 = sand.u32 %s101, 1
        %s406 = scalar_lea.sflag [#allocation4], %s405
        %s407 = sand.u32 %s101, 1
        %s408 = smul.addr %s407, 8
        %s409 = scalar_lea.vmem [#allocation7], %s408
        %s410 = sand.u32 %s129, 1
        %s411 = scalar_lea.sflag [#allocation9], %s410
        %s412 = sand.u32 %s129, 1
        %s413 = smul.addr %s412, 8
        %s414 = scalar_lea.vmem [#allocation8], %s413
        // Predicated region
        $region37: #{tpu_custom_call.1} parent=27 // pred_check
          %p415 = pneg %p111
        $region38: #{tpu_custom_call.1} parent=27 // pred_check_branch
          %417 = sbr.rel (%p415) target = $region40
        $region39: #{tpu_custom_call.1} parent=27 // pred_region
          %s419 = ssub.s32 128, 128
          %420 = vsyncadd %s406, %s419
          %s421 = sadd.s32 %s30, %s29
          %s422 = smul.addr %s421, 128
          %s423 = scalar_lea.hbm %s2, %s422
          %s425 = sshll.u32 %s409, 4
          %s426 = int_to_ptr.vmem [resolvable:$true] %s425
          %428 = dma.vmem_to_hbm [thread:$0]  %s426, 128, %s423, %s406
        $region40: #{tpu_custom_call.1} parent=27 // pred_fallthru
          _
        // Predicated region
        $region41: #{tpu_custom_call.1} parent=27 // pred_check
          %p429 = pneg %p139
        $region42: #{tpu_custom_call.1} parent=27 // pred_check_branch
          %431 = sbr.rel (%p429) target = $region44
        $region43: #{tpu_custom_call.1} parent=27 // pred_region
          %s433 = ssub.s32 128, 128
          %434 = vsyncadd %s411, %s433
          %s435 = sadd.s32 %s30, %s29
          %s436 = smul.addr %s435, 128
          %s437 = scalar_lea.hbm %s3, %s436
          %s439 = sshll.u32 %s414, 4
          %s440 = int_to_ptr.vmem [resolvable:$true] %s439
          %442 = dma.vmem_to_hbm [thread:$0]  %s440, 128, %s437, %s411
        $region44: #{tpu_custom_call.1} parent=27 // pred_fallthru
          _
      $region28: #{tpu_custom_call.1} parent=5 // pred_fallthru
        _
      %p443 = scmp.le.s32.totalorder 2, %s20
      // Predicated region
      $region45: #{tpu_custom_call.1} parent=5 // pred_check
        %p444 = pneg %p443
      $region46: #{tpu_custom_call.1} parent=5 // pred_check_branch
        %446 = sbr.rel (%p444) target = $region48
      $region47: #{tpu_custom_call.1} parent=5 // pred_region
        %s447 = ssub.s32 %s20, 2
        // Predicated region
        $region49: #{tpu_custom_call.1} parent=47 // pred_check
          %p448 = pneg %p117
        $region50: #{tpu_custom_call.1} parent=47 // pred_check_branch
          %450 = sbr.rel (%p448) target = $region52
        $region51: #{tpu_custom_call.1} parent=47 // pred_region
          %s451 = sand.u32 %s102, 1
          %s452 = scalar_lea.sflag [#allocation4], %s451
          %s453 = sand.u32 %s102, 1
          %s454 = smul.addr %s453, 8
          %s455 = scalar_lea.vmem [#allocation7], %s454
          %456 = dma.done %s452, 128
        $region52: #{tpu_custom_call.1} parent=47 // pred_fallthru
          _
        // Predicated region
        $region53: #{tpu_custom_call.1} parent=47 // pred_check
          %p457 = pneg %p145
        $region54: #{tpu_custom_call.1} parent=47 // pred_check_branch
          %459 = sbr.rel (%p457) target = $region56
        $region55: #{tpu_custom_call.1} parent=47 // pred_region
          %s460 = sand.u32 %s130, 1
          %s461 = scalar_lea.sflag [#allocation9], %s460
          %s462 = sand.u32 %s130, 1
          %s463 = smul.addr %s462, 8
          %s464 = scalar_lea.vmem [#allocation8], %s463
          %465 = dma.done %s461, 128
        $region56: #{tpu_custom_call.1} parent=47 // pred_fallthru
          _
      $region48: #{tpu_custom_call.1} parent=5 // pred_fallthru
        _
    $region6: #{tpu_custom_call.1} parent=1 // loop_footer
      %s24 = sadd.s32 1, %s20
    $region7: #{tpu_custom_call.1} parent=1 // loop_footer_branch
      %19 = sbr.rel target = $region3
    $region8: #{tpu_custom_call.1} parent=1 // loop_exit
      _
    %466 = vsyncpa [#allocation3], 1
    %s467 = scalar_lea.sflag [#allocation3], 1
    %468 = vsyncpa %s467, 1
    %469 = vsyncpa [#allocation6], 1
    %470 = vsyncpa [#allocation4], 1
    %s471 = scalar_lea.sflag [#allocation4], 1
    %472 = vsyncpa %s471, 1
    %473 = vsyncpa [#allocation9], 1
    %s474 = scalar_lea.sflag [#allocation9], 1
    %475 = vsyncpa %s474, 1

// kernel: tpu_custom_call.1
$region0: #{tpu_custom_call.1}
  #allocation0 [shape = 'u32[]', space=smem, size = 0x4, offset = 0x4, fixed_abs, tag = 'smem constant byte address 0x4 - core index']
  #allocation1 [shape = 'u32[144,128]{1,0:T(1,128)}', space=vmem, size = 0x12000, scoped, tag = 'internal scratch']
  %s0 = inlined_call_operand.hbm [shape: f32[2,8,32], index: 0, kind: input, shape index: {}]
  %s1 = inlined_call_operand.hbm [shape: f32[2,8,32], index: 1, kind: input, shape index: {}]
  %s2 = inlined_call_operand.hbm [shape: f32[2,8,32], index: 2, kind: output, shape index: {0}]
  %s3 = inlined_call_operand.hbm [shape: f32[2,8,8], index: 3, kind: output, shape index: {1}]
  %4 = xla_tuple %s2, %s3
  %s5 = sld [smem:[#allocation0]]
  $region57: #{tpu_custom_call.1} parent=0
    _
  %s7 = ssub.s32 1, %s5
  %s8 = scalar_select 0, %s7, %s5
  $region1: #{tpu_custom_call.1} parent=0
    #allocation2 [shape = 'u8[8192]{0}', space=vmem, size = 0x2000, scoped, tag = 'input window, operand 0']
    #allocation3 [shape = 's32[2]{0}', space=sflag, size = 0x8, scoped, tag = 'scoped memory for tpu_custom_call.1']
    #allocation4 [shape = 's32[2]{0}', space=sflag, size = 0x8, scoped, tag = 'scoped memory for tpu_custom_call.1']
    #allocation5 [shape = 'u8[8192]{0}', space=vmem, size = 0x2000, scoped, tag = 'input window, operand 1']
    #allocation6 [shape = 's32[2]{0}', space=sflag, size = 0x8, scoped, tag = 'scoped memory for tpu_custom_call.1']
    #allocation7 [shape = 'u8[8192]{0}', space=vmem, size = 0x2000, scoped, tag = 'output window, operand 0']
    #allocation8 [shape = 'u8[8192]{0}', space=vmem, size = 0x2000, scoped, tag = 'output window, operand 1']
    #allocation9 [shape = 's32[2]{0}', space=sflag, size = 0x8, scoped, tag = 'scoped memory for tpu_custom_call.1']
    %9 = vsyncpa [#allocation3], 0
    %s10 = scalar_lea.sflag [#allocation3], 1
    %11 = vsyncpa %s10, 0
    %12 = vsyncpa [#allocation6], 0
    %s13 = scalar_lea.sflag [#allocation6], 1
    %14 = vsyncpa %s13, 0
    %15 = vsyncpa [#allocation4], 0
    %s16 = scalar_lea.sflag [#allocation4], 1
    %17 = vsyncpa %s16, 0
    %18 = vsyncpa [#allocation9], 0
    %s19 = scalar_lea.sflag [#allocation9], 1
    %20 = vsyncpa %s19, 0
    loop: start=0, step=1, limit=4
    $region2: #{tpu_custom_call.1} parent=1 // loop_pre_header
      _
    $region3: #{tpu_custom_call.1} parent=1 // loop_header
      %s22 = sphi 0, %s26
      %p23 = scmp.ge.s32.totalorder %s22, 4
      %s29 = sphi 0, %s41
      %s30 = sphi 0, %s37
      %s31 = sphi 0, %s29
      %s32 = sphi 0, %s30
      %s33 = sphi 0, %s31
      %s34 = sphi 0, %s32
      %s46 = sphi 0, %s48
      %s49 = sphi 0, %s46
      %s50 = sphi 0, %s49
      %s66 = sphi 0, %s50
      %s72 = sphi 0, %s74
      %s75 = sphi 0, %s72
      %s76 = sphi 0, %s75
      %s92 = sphi 0, %s76
      %s100 = sphi 0, %s102
      %s103 = sphi 0, %s100
      %s104 = sphi 0, %s103
      %s120 = sphi 0, %s104
      %s128 = sphi 0, %s130
      %s131 = sphi 0, %s128
      %s132 = sphi 0, %s131
      %s148 = sphi 0, %s132
    $region4: #{tpu_custom_call.1} parent=1 // loop_header_branch
      %25 = sbr.rel (%p23) target = $region8
    $region5: #{tpu_custom_call.1} parent=1 // loop_body
      %s27 = ssub.s32 %s22, 1
      %s28 = ssub.s32 %s22, 2
      %s35 = sadd.s32 1, %s30
      %p36 = scmp.ge.s32.totalorder %s35, 1
      %s37 = scalar_select %p36, 0, %s35
      %s38 = sadd.s32 1, %s29
      %s39 = scalar_select %p36, %s38, %s29
      %p40 = scmp.ge.s32.totalorder %s39, 2
      %s41 = scalar_select %p40, 0, %s39
      %s42 = ssub.s32 %s29, %s41
      %s43 = ssub.s32 %s30, %s37
      %s44 = sor.u32 %s42, %s43
      %p45 = scmp.eq.s32.totalorder %s44, 0
      %s47 = sadd.s32 %s46, 1
      %s48 = scalar_select %p45, %s46, %s47
      %p51 = pneg %p45
      %p52 = scmp.eq.s32.totalorder %s22, 1
      %p53 = por %p51, %p52
      %p54 = scmp.ne.s32.totalorder %s46, %s49
      %p55 = scmp.eq.s32.totalorder %s22, 0
      %p56 = por %p54, %p55
      %p57 = scmp.ne.s32.totalorder %s46, %s49
      %p58 = scmp.eq.s32.totalorder %s27, 1
      %p59 = por %p57, %p58
      %p60 = scmp.ne.s32.totalorder %s49, %s50
      %p61 = scmp.eq.s32.totalorder %s27, 0
      %p62 = por %p60, %p61
      %p63 = scmp.ne.s32.totalorder %s49, %s50
      %p64 = scmp.eq.s32.totalorder %s28, 1
      %p65 = por %p63, %p64
      %p67 = scmp.ne.s32.totalorder %s50, %s66
      %p68 = scmp.eq.s32.totalorder %s28, 0
      %p69 = por %p67, %p68
      %s70 = ssub.s32 %s29, %s41
      %p71 = scmp.eq.s32.totalorder %s70, 0
      %s73 = sadd.s32 %s72, 1
      %s74 = scalar_select %p71, %s72, %s73
      %p77 = pneg %p71
      %p78 = scmp.eq.s32.totalorder %s22, 1
      %p79 = por %p77, %p78
      %p80 = scmp.ne.s32.totalorder %s72, %s75
      %p81 = scmp.eq.s32.totalorder %s22, 0
      %p82 = por %p80, %p81
      %p83 = scmp.ne.s32.totalorder %s72, %s75
      %p84 = scmp.eq.s32.totalorder %s27, 1
      %p85 = por %p83, %p84
      %p86 = scmp.ne.s32.totalorder %s75, %s76
      %p87 = scmp.eq.s32.totalorder %s27, 0
      %p88 = por %p86, %p87
      %p89 = scmp.ne.s32.totalorder %s75, %s76
      %p90 = scmp.eq.s32.totalorder %s28, 1
      %p91 = por %p89, %p90
      %p93 = scmp.ne.s32.totalorder %s76, %s92
      %p94 = scmp.eq.s32.totalorder %s28, 0
      %p95 = por %p93, %p94
      %s96 = ssub.s32 %s29, %s41
      %s97 = ssub.s32 %s30, %s37
      %s98 = sor.u32 %s96, %s97
      %p99 = scmp.eq.s32.totalorder %s98, 0
      %s101 = sadd.s32 %s100, 1
      %s102 = scalar_select %p99, %s100, %s101
      %p105 = pneg %p99
      %p106 = scmp.eq.s32.totalorder %s22, 1
      %p107 = por %p105, %p106
      %p108 = scmp.ne.s32.totalorder %s100, %s103
      %p109 = scmp.eq.s32.totalorder %s22, 0
      %p110 = por %p108, %p109
      %p111 = scmp.ne.s32.totalorder %s100, %s103
      %p112 = scmp.eq.s32.totalorder %s27, 1
      %p113 = por %p111, %p112
      %p114 = scmp.ne.s32.totalorder %s103, %s104
      %p115 = scmp.eq.s32.totalorder %s27, 0
      %p116 = por %p114, %p115
      %p117 = scmp.ne.s32.totalorder %s103, %s104
      %p118 = scmp.eq.s32.totalorder %s28, 1
      %p119 = por %p117, %p118
      %p121 = scmp.ne.s32.totalorder %s104, %s120
      %p122 = scmp.eq.s32.totalorder %s28, 0
      %p123 = por %p121, %p122
      %s124 = ssub.s32 %s29, %s41
      %s125 = ssub.s32 %s30, %s37
      %s126 = sor.u32 %s124, %s125
      %p127 = scmp.eq.s32.totalorder %s126, 0
      %s129 = sadd.s32 %s128, 1
      %s130 = scalar_select %p127, %s128, %s129
      %p133 = pneg %p127
      %p134 = scmp.eq.s32.totalorder %s22, 1
      %p135 = por %p133, %p134
      %p136 = scmp.ne.s32.totalorder %s128, %s131
      %p137 = scmp.eq.s32.totalorder %s22, 0
      %p138 = por %p136, %p137
      %p139 = scmp.ne.s32.totalorder %s128, %s131
      %p140 = scmp.eq.s32.totalorder %s27, 1
      %p141 = por %p139, %p140
      %p142 = scmp.ne.s32.totalorder %s131, %s132
      %p143 = scmp.eq.s32.totalorder %s27, 0
      %p144 = por %p142, %p143
      %p145 = scmp.ne.s32.totalorder %s131, %s132
      %p146 = scmp.eq.s32.totalorder %s28, 1
      %p147 = por %p145, %p146
      %p149 = scmp.ne.s32.totalorder %s132, %s148
      %p150 = scmp.eq.s32.totalorder %s28, 0
      %p151 = por %p149, %p150
      %p152 = scmp.le.s32.totalorder 1, %s22
      %p153 = scmp.lt.s32.totalorder %s22, 3
      %p154 = pnand %p152, %p153
      %p155 = pneg %p154
      // Predicated region
      $region9: #{tpu_custom_call.1} parent=5 // pred_check
        _
      $region10: #{tpu_custom_call.1} parent=5 // pred_check_branch
        %157 = sbr.rel (%p154) target = $region12
      $region11: #{tpu_custom_call.1} parent=5 // pred_region
        %s158 = ssub.s32 %s22, 1
      $region12: #{tpu_custom_call.1} parent=5 // pred_fallthru
        _
      %p159 = scmp.lt.s32.totalorder %s22, 2
      // Predicated region
      $region13: #{tpu_custom_call.1} parent=5 // pred_check
        %p160 = pneg %p159
      $region14: #{tpu_custom_call.1} parent=5 // pred_check_branch
        %162 = sbr.rel (%p160) target = $region16
      $region15: #{tpu_custom_call.1} parent=5 // pred_region
        // Predicated region
        $region17: #{tpu_custom_call.1} parent=15 // pred_check
          %p163 = pneg %p56
        $region18: #{tpu_custom_call.1} parent=15 // pred_check_branch
          %165 = sbr.rel (%p163) target = $region20
        $region19: #{tpu_custom_call.1} parent=15 // pred_region
          %s166 = sand.u32 %s46, 1
          %s167 = scalar_lea.sflag [#allocation3], %s166
          %s168 = sand.u32 %s46, 1
          %s169 = smul.addr %s168, 8
          %s170 = scalar_lea.vmem [#allocation2], %s169
          %s172 = ssub.s32 128, 128
          %173 = vsyncadd %s167, %s172
          %s174 = sadd.s32 %s30, %s29
          %s175 = smul.addr %s174, 128
          %s176 = scalar_lea.hbm %s0, %s175
          %s178 = sshll.u32 %s170, 4
          %s179 = int_to_ptr.vmem [resolvable:$true] %s178
          %181 = dma.hbm_to_vmem [thread:$0]  %s176, 128, %s179, %s167
        $region20: #{tpu_custom_call.1} parent=15 // pred_fallthru
          _
        // Predicated region
        $region21: #{tpu_custom_call.1} parent=15 // pred_check
          %p182 = pneg %p82
        $region22: #{tpu_custom_call.1} parent=15 // pred_check_branch
          %184 = sbr.rel (%p182) target = $region24
        $region23: #{tpu_custom_call.1} parent=15 // pred_region
          %s185 = sand.u32 %s72, 1
          %s186 = scalar_lea.sflag [#allocation6], %s185
          %s187 = sand.u32 %s72, 1
          %s188 = smul.addr %s187, 8
          %s189 = scalar_lea.vmem [#allocation5], %s188
          %s191 = ssub.s32 128, 128
          %192 = vsyncadd %s186, %s191
          %s193 = smul.addr %s29, 128
          %s194 = scalar_lea.hbm %s1, %s193
          %s196 = sshll.u32 %s189, 4
          %s197 = int_to_ptr.vmem [resolvable:$true] %s196
          %199 = dma.hbm_to_vmem [thread:$0]  %s194, 128, %s197, %s186
        $region24: #{tpu_custom_call.1} parent=15 // pred_fallthru
          _
      $region16: #{tpu_custom_call.1} parent=5 // pred_fallthru
        _
      %p200 = scmp.le.s32.totalorder 1, %s22
      %p201 = scmp.lt.s32.totalorder %s22, 3
      %p202 = pnand %p200, %p201
      %p203 = pneg %p202
      // Predicated region
      $region25: #{tpu_custom_call.1} parent=5 // pred_check
        _
      $region26: #{tpu_custom_call.1} parent=5 // pred_check_branch
        %205 = sbr.rel (%p202) target = $region28
      $region27: #{tpu_custom_call.1} parent=5 // pred_region
        %s206 = ssub.s32 %s22, 1
        %s207 = sand.u32 %s49, 1
        %s208 = scalar_lea.sflag [#allocation3], %s207
        %s209 = sand.u32 %s49, 1
        %s210 = smul.addr %s209, 8
        %s211 = scalar_lea.vmem [#allocation2], %s210
        // Predicated region
        $region29: #{tpu_custom_call.1} parent=27 // pred_check
          %p212 = pneg %p62
        $region30: #{tpu_custom_call.1} parent=27 // pred_check_branch
          %214 = sbr.rel (%p212) target = $region32
        $region31: #{tpu_custom_call.1} parent=27 // pred_region
          %215 = dma.done %s208, 128
        $region32: #{tpu_custom_call.1} parent=27 // pred_fallthru
          _
        %s216 = sand.u32 %s75, 1
        %s217 = scalar_lea.sflag [#allocation6], %s216
        %s218 = sand.u32 %s75, 1
        %s219 = smul.addr %s218, 8
        %s220 = scalar_lea.vmem [#allocation5], %s219
        // Predicated region
        $region33: #{tpu_custom_call.1} parent=27 // pred_check
          %p221 = pneg %p88
        $region34: #{tpu_custom_call.1} parent=27 // pred_check_branch
          %223 = sbr.rel (%p221) target = $region36
        $region35: #{tpu_custom_call.1} parent=27 // pred_region
          %224 = dma.done %s217, 128
        $region36: #{tpu_custom_call.1} parent=27 // pred_fallthru
          _
        %s225 = sand.u32 %s49, 1
        %s226 = scalar_lea.sflag [#allocation3], %s225
        %s227 = sand.u32 %s49, 1
        %s228 = smul.addr %s227, 8
        %s229 = scalar_lea.vmem [#allocation2], %s228
        %p230 = pneg %p62
        %p231 = pneg %p59
        %s232 = sand.u32 %s75, 1
        %s233 = scalar_lea.sflag [#allocation6], %s232
        %s234 = sand.u32 %s75, 1
        %s235 = smul.addr %s234, 8
        %s236 = scalar_lea.vmem [#allocation5], %s235
        %p237 = pneg %p88
        %p238 = pneg %p85
        %p239 = pneg %p116
        %p240 = pneg %p113
        %s241 = sand.u32 %s103, 1
        %s242 = scalar_lea.sflag [#allocation4], %s241
        %s243 = sand.u32 %s103, 1
        %s244 = smul.addr %s243, 8
        %s245 = scalar_lea.vmem [#allocation7], %s244
        %p246 = pneg %p144
        %p247 = pneg %p141
        %s248 = sand.u32 %s131, 1
        %s249 = scalar_lea.sflag [#allocation9], %s248
        %s250 = sand.u32 %s131, 1
        %s251 = smul.addr %s250, 8
        %s252 = scalar_lea.vmem [#allocation8], %s251
        %v253 = vld [vmem:[%s211] sm:$0xff]
        %v254 = vld [vmem:[%s220] sm:$0xff]
        %vm255 = vcmask 261120
        %v257 = vsel %vm255, %v253, 0
        %v260 = vsel %vm255, %v254, 0
        %262 = vmatprep.subr.mxu0 0.0
        %263 = vmatpush1.xpose.msra.mxu0 %v260
        %264 = vmatprep.subr.mxu0 0.0
        %265 = vmatpush1.xpose.msra.mxu0 0.0
        %266 = vmatprep.subr.mxu0 0.0
        %267 = vmatpush1.xpose.msra.mxu0 0.0
        %268 = vmatprep.subr.mxu0 0.0
        %269 = vmatpush1.xpose.msra.mxu0 0.0
        %270 = vmatprep.subr.mxu0 0.0
        %271 = vmatpush1.xpose.msra.mxu0 0.0
        %272 = vmatprep.subr.mxu0 0.0
        %273 = vmatpush1.xpose.msra.mxu0 0.0
        %274 = vmatprep.subr.mxu0 0.0
        %275 = vmatpush1.xpose.msra.mxu0 0.0
        %276 = vmatprep.subr.mxu0 0.0
        %277 = vmatpush1.xpose.msra.mxu0 0.0
        %278 = vmatprep.subr.mxu0 0.0
        %279 = vmatpush1.xpose.msra.mxu0 0.0
        %280 = vmatprep.subr.mxu0 0.0
        %281 = vmatpush1.xpose.msra.mxu0 0.0
        %282 = vmatprep.subr.mxu0 0.0
        %283 = vmatpush1.xpose.msra.mxu0 0.0
        %284 = vmatprep.subr.mxu0 0.0
        %285 = vmatpush1.xpose.msra.mxu0 0.0
        %286 = vmatprep.subr.mxu0 0.0
        %287 = vmatpush1.xpose.msra.mxu0 0.0
        %288 = vmatprep.subr.mxu0 0.0
        %289 = vmatpush1.xpose.msra.mxu0 0.0
        %290 = vmatprep.subr.mxu0 0.0
        %291 = vmatpush1.xpose.msra.mxu0 0.0
        %292 = vmatprep.subr.mxu0 0.0
        %293 = vmatpush1.xpose.msra.mxu0 0.0
        %294 = vmatprep.subr.mxu0 0.0
        %295 = vmatpush1.xpose.msra.mxu0 0.0
        %296 = vmatprep.subr.mxu0 0.0
        %297 = vmatpush1.xpose.msra.mxu0 0.0
        %298 = vmatprep.subr.mxu0 0.0
        %299 = vmatpush1.xpose.msra.mxu0 0.0
        %300 = vmatprep.subr.mxu0 0.0
        %301 = vmatpush1.xpose.msra.mxu0 0.0
        %302 = vmatprep.subr.mxu0 0.0
        %303 = vmatpush1.xpose.msra.mxu0 0.0
        %304 = vmatprep.subr.mxu0 0.0
        %305 = vmatpush1.xpose.msra.mxu0 0.0
        %306 = vmatprep.subr.mxu0 0.0
        %307 = vmatpush1.xpose.msra.mxu0 0.0
        %308 = vmatprep.subr.mxu0 0.0
        %309 = vmatpush1.xpose.msra.mxu0 0.0
        %310 = vmatprep.subr.mxu0 0.0
        %311 = vmatpush1.xpose.msra.mxu0 0.0
        %312 = vmatprep.subr.mxu0 0.0
        %313 = vmatpush1.xpose.msra.mxu0 0.0
        %314 = vmatprep.subr.mxu0 0.0
        %315 = vmatpush1.xpose.msra.mxu0 0.0
        %316 = vmatprep.subr.mxu0 0.0
        %317 = vmatpush1.xpose.msra.mxu0 0.0
        %318 = vmatprep.subr.mxu0 0.0
        %319 = vmatpush1.xpose.msra.mxu0 0.0
        %320 = vmatprep.subr.mxu0 0.0
        %321 = vmatpush1.xpose.msra.mxu0 0.0
        %322 = vmatprep.subr.mxu0 0.0
        %323 = vmatpush1.xpose.msra.mxu0 0.0
        %324 = vmatprep.subr.mxu0 0.0
        %325 = vmatpush1.xpose.msra.mxu0 0.0
        %326 = vmatprep.mubr.f32.mxu0 0.0
        %327 = vmatmul.mubr.f32.gmra.mrb[0].mxu0 %v257
        %v328 = vpop.f32.mrb[0].mxu0
        %v329 = vadd.f32 0.0, %v328
        %v330 = vpop.f32.mrb[0].mxu0
        %331 = vdwg.mxu0
        %vm332 = vcmask 64512
        %v333 = vsel %vm332, %v329, -inf
        %334 = vmax.xlane.f32.xlu0 %v333
        %v335 = vpop.xlane.xlu0 %334
        %v336 = vsub.f32 %v329, %v335
        %v337 = vmul.f32 %v336, 1.442695
        %v338 = vpow.pop %v337
        %v339 = vsel %vm332, %v338, 0.0
        %340 = vadd.xlane.f32.xlu0 %v339
        %v341 = vpop.xlane.xlu0 %340
        %v342 = vrcp.pop %v341
        %v343 = vmul.f32 %v341, %v342
        %v344 = vsub.f32 2.0, %v343
        %v345 = vmul.f32 %v342, %v344
        %v346 = vmul.f32 %v338, %v345
        %v348 = vsel %vm332, %v346, 0
        %350 = vmatprep.subr.mxu0 0.0
        %351 = vmatpush1.msra.mxu0 %v254
        %352 = vmatprep.subr.mxu0 0.0
        %353 = vmatpush1.msra.mxu0 0.0
        %354 = vmatprep.subr.mxu0 0.0
        %355 = vmatpush1.msra.mxu0 0.0
        %356 = vmatprep.subr.mxu0 0.0
        %357 = vmatpush1.msra.mxu0 0.0
        %358 = vmatprep.subr.mxu0 0.0
        %359 = vmatpush1.msra.mxu0 0.0
        %360 = vmatprep.subr.mxu0 0.0
        %361 = vmatpush1.msra.mxu0 0.0
        %362 = vmatprep.subr.mxu0 0.0
        %363 = vmatpush1.msra.mxu0 0.0
        %364 = vmatprep.subr.mxu0 0.0
        %365 = vmatpush1.msra.mxu0 0.0
        %366 = vmatprep.subr.mxu0 0.0
        %367 = vmatpush1.msra.mxu0 0.0
        %368 = vmatprep.subr.mxu0 0.0
        %369 = vmatpush1.msra.mxu0 0.0
        %370 = vmatprep.subr.mxu0 0.0
        %371 = vmatpush1.msra.mxu0 0.0
        %372 = vmatprep.subr.mxu0 0.0
        %373 = vmatpush1.msra.mxu0 0.0
        %374 = vmatprep.subr.mxu0 0.0
        %375 = vmatpush1.msra.mxu0 0.0
        %376 = vmatprep.subr.mxu0 0.0
        %377 = vmatpush1.msra.mxu0 0.0
        %378 = vmatprep.subr.mxu0 0.0
        %379 = vmatpush1.msra.mxu0 0.0
        %380 = vmatprep.subr.mxu0 0.0
        %381 = vmatpush1.msra.mxu0 0.0
        %382 = vmatprep.subr.mxu0 0.0
        %383 = vmatpush1.msra.mxu0 0.0
        %384 = vmatprep.subr.mxu0 0.0
        %385 = vmatpush1.msra.mxu0 0.0
        %386 = vmatprep.subr.mxu0 0.0
        %387 = vmatpush1.msra.mxu0 0.0
        %388 = vmatprep.subr.mxu0 0.0
        %389 = vmatpush1.msra.mxu0 0.0
        %390 = vmatprep.subr.mxu0 0.0
        %391 = vmatpush1.msra.mxu0 0.0
        %392 = vmatprep.subr.mxu0 0.0
        %393 = vmatpush1.msra.mxu0 0.0
        %394 = vmatprep.subr.mxu0 0.0
        %395 = vmatpush1.msra.mxu0 0.0
        %396 = vmatprep.subr.mxu0 0.0
        %397 = vmatpush1.msra.mxu0 0.0
        %398 = vmatprep.subr.mxu0 0.0
        %399 = vmatpush1.msra.mxu0 0.0
        %400 = vmatprep.subr.mxu0 0.0
        %401 = vmatpush1.msra.mxu0 0.0
        %402 = vmatprep.subr.mxu0 0.0
        %403 = vmatpush1.msra.mxu0 0.0
        %404 = vmatprep.subr.mxu0 0.0
        %405 = vmatpush1.msra.mxu0 0.0
        %406 = vmatprep.subr.mxu0 0.0
        %407 = vmatpush1.msra.mxu0 0.0
        %408 = vmatprep.subr.mxu0 0.0
        %409 = vmatpush1.msra.mxu0 0.0
        %410 = vmatprep.subr.mxu0 0.0
        %411 = vmatpush1.msra.mxu0 0.0
        %412 = vmatprep.subr.mxu0 0.0
        %413 = vmatpush1.msra.mxu0 0.0
        %414 = vmatprep.mubr.f32.mxu0 0.0
        %415 = vmatmul.mubr.f32.gmra.mrb[0].mxu0 %v348
        %v416 = vpop.f32.mrb[0].mxu0
        %v417 = vadd.f32 0.0, %v416
        %v418 = vpop.f32.mrb[0].mxu0
        %419 = vdwg.mxu0
        %420 = vst.msk [vmem:[%s252] sm:$0xff] %vm332, %v346
        %421 = vst.msk [vmem:[%s245] sm:$0xff] %vm255, %v417
        %s422 = sand.u32 %s103, 1
        %s423 = scalar_lea.sflag [#allocation4], %s422
        %s424 = sand.u32 %s103, 1
        %s425 = smul.addr %s424, 8
        %s426 = scalar_lea.vmem [#allocation7], %s425
        %s427 = sand.u32 %s131, 1
        %s428 = scalar_lea.sflag [#allocation9], %s427
        %s429 = sand.u32 %s131, 1
        %s430 = smul.addr %s429, 8
        %s431 = scalar_lea.vmem [#allocation8], %s430
        // Predicated region
        $region37: #{tpu_custom_call.1} parent=27 // pred_check
          %p432 = pneg %p113
        $region38: #{tpu_custom_call.1} parent=27 // pred_check_branch
          %434 = sbr.rel (%p432) target = $region40
        $region39: #{tpu_custom_call.1} parent=27 // pred_region
          %s436 = ssub.s32 128, 128
          %437 = vsyncadd %s423, %s436
          %s438 = sadd.s32 %s32, %s31
          %s439 = smul.addr %s438, 128
          %s440 = scalar_lea.hbm %s2, %s439
          %s442 = sshll.u32 %s426, 4
          %s443 = int_to_ptr.vmem [resolvable:$true] %s442
          %445 = dma.vmem_to_hbm [thread:$0]  %s443, 128, %s440, %s423
        $region40: #{tpu_custom_call.1} parent=27 // pred_fallthru
          _
        // Predicated region
        $region41: #{tpu_custom_call.1} parent=27 // pred_check
          %p446 = pneg %p141
        $region42: #{tpu_custom_call.1} parent=27 // pred_check_branch
          %448 = sbr.rel (%p446) target = $region44
        $region43: #{tpu_custom_call.1} parent=27 // pred_region
          %s450 = ssub.s32 128, 128
          %451 = vsyncadd %s428, %s450
          %s452 = sadd.s32 %s32, %s31
          %s453 = smul.addr %s452, 128
          %s454 = scalar_lea.hbm %s3, %s453
          %s456 = sshll.u32 %s431, 4
          %s457 = int_to_ptr.vmem [resolvable:$true] %s456
          %459 = dma.vmem_to_hbm [thread:$0]  %s457, 128, %s454, %s428
        $region44: #{tpu_custom_call.1} parent=27 // pred_fallthru
          _
      $region28: #{tpu_custom_call.1} parent=5 // pred_fallthru
        _
      %p460 = scmp.le.s32.totalorder 2, %s22
      // Predicated region
      $region45: #{tpu_custom_call.1} parent=5 // pred_check
        %p461 = pneg %p460
      $region46: #{tpu_custom_call.1} parent=5 // pred_check_branch
        %463 = sbr.rel (%p461) target = $region48
      $region47: #{tpu_custom_call.1} parent=5 // pred_region
        %s464 = ssub.s32 %s22, 2
        // Predicated region
        $region49: #{tpu_custom_call.1} parent=47 // pred_check
          %p465 = pneg %p119
        $region50: #{tpu_custom_call.1} parent=47 // pred_check_branch
          %467 = sbr.rel (%p465) target = $region52
        $region51: #{tpu_custom_call.1} parent=47 // pred_region
          %s468 = sand.u32 %s104, 1
          %s469 = scalar_lea.sflag [#allocation4], %s468
          %s470 = sand.u32 %s104, 1
          %s471 = smul.addr %s470, 8
          %s472 = scalar_lea.vmem [#allocation7], %s471
          %473 = dma.done %s469, 128
        $region52: #{tpu_custom_call.1} parent=47 // pred_fallthru
          _
        // Predicated region
        $region53: #{tpu_custom_call.1} parent=47 // pred_check
          %p474 = pneg %p147
        $region54: #{tpu_custom_call.1} parent=47 // pred_check_branch
          %476 = sbr.rel (%p474) target = $region56
        $region55: #{tpu_custom_call.1} parent=47 // pred_region
          %s477 = sand.u32 %s132, 1
          %s478 = scalar_lea.sflag [#allocation9], %s477
          %s479 = sand.u32 %s132, 1
          %s480 = smul.addr %s479, 8
          %s481 = scalar_lea.vmem [#allocation8], %s480
          %482 = dma.done %s478, 128
        $region56: #{tpu_custom_call.1} parent=47 // pred_fallthru
          _
      $region48: #{tpu_custom_call.1} parent=5 // pred_fallthru
        _
    $region6: #{tpu_custom_call.1} parent=1 // loop_footer
      %s26 = sadd.s32 1, %s22
    $region7: #{tpu_custom_call.1} parent=1 // loop_footer_branch
      %21 = sbr.rel target = $region3
    $region8: #{tpu_custom_call.1} parent=1 // loop_exit
      _
    %483 = vsyncpa [#allocation3], 1
    %s484 = scalar_lea.sflag [#allocation3], 1
    %485 = vsyncpa %s484, 1
    %486 = vsyncpa [#allocation6], 1
    %s487 = scalar_lea.sflag [#allocation6], 1
    %488 = vsyncpa %s487, 1
    %489 = vsyncpa [#allocation4], 1
    %s490 = scalar_lea.sflag [#allocation4], 1
    %491 = vsyncpa %s490, 1
    %492 = vsyncpa [#allocation9], 1
    %s493 = scalar_lea.sflag [#allocation9], 1
    %494 = vsyncpa %s493, 1

</llo_original>
